<compile_context>
chip_gen: v7x
topology: tpu7x:2x2x1
jax: 0.10.0
libtpu: 0.0.40
codegen_flags: <defaults>
</compile_context>

<pallas_src>
import jax
import jax.numpy as jnp
from jax import lax
from jax.experimental import pallas as pl
from jax.experimental.pallas import tpu as pltpu


def _round_up(x, m):
    return (x + m - 1) // m * m


def _vmem_limit_bytes(requested=100 * 1024 * 1024):
    """Per-chip VMEM limit: ~100 MiB on v5e/v6e, ~56 MiB on v7x (64 MiB/TC)."""
    cap = 128 * 1024 * 1024
    try:
        cap = pltpu.get_tpu_info().vmem_capacity_bytes
    except Exception:
        pass
    return int(min(requested, cap * 7 // 8))


# ---------------------------------------------------------------------------
# Embedding row-gather kernel (BPRMF.forward).
#   scalar-prefetch: u_idx/p_idx/n_idx  (B_pad,) int32 in SMEM
#   inputs         : ue/ie              full tables, resident (single-buffered) in VMEM
#   outputs        : uo/po/no           (TB, D) blocks
# ---------------------------------------------------------------------------
def _gather_kernel(u_idx_ref, p_idx_ref, n_idx_ref,
                   ue_ref, ie_ref,
                   uo_ref, po_ref, no_ref):
    tb = uo_ref.shape[0]
    n_users = ue_ref.shape[0]
    n_items = ie_ref.shape[0]
    base = pl.program_id(0) * tb

    def body(r, carry):
        # Scalar index reads from SMEM; clamp so an out-of-range index can
        # never read outside the resident table.
        u = jnp.clip(u_idx_ref[base + r], 0, n_users - 1)
        p = jnp.clip(p_idx_ref[base + r], 0, n_items - 1)
        n = jnp.clip(n_idx_ref[base + r], 0, n_items - 1)
        # Dynamic-slice row gather from the VMEM-resident tables: O(D) per row.
        uo_ref[pl.ds(r, 1), :] = ue_ref[pl.ds(u, 1), :]
        po_ref[pl.ds(r, 1), :] = ie_ref[pl.ds(p, 1), :]
        no_ref[pl.ds(r, 1), :] = ie_ref[pl.ds(n, 1), :]
        return carry

    lax.fori_loop(0, tb, body, 0)


def bprmf_forward(users, pos_items, neg_items, aux, user_emb, item_emb,
                  *, max_rows_per_step=256):
    """Equivalent of BPRMF.forward: returns (u_emb, pos_emb, neg_emb, aux)."""
    B = users.shape[0]
    n_users, D = user_emb.shape
    n_items, D2 = item_emb.shape
    assert D == D2
    dtype = user_emb.dtype
    itemsize = jnp.dtype(dtype).itemsize

    # Batch blocking: >= 8 rows (sublane-dense) per grid step, large blocks to
    # amortize the ~0.35us per-step overhead.
    B_pad = _round_up(B, 8)
    TB = B_pad if B_pad <= max_rows_per_step else max_rows_per_step
    B_pad = _round_up(B_pad, TB)
    n_steps = B_pad // TB

    def prep(idx):
        idx = idx.astype(jnp.int32)
        if B_pad != B:
            idx = jnp.pad(idx, (0, B_pad - B))
        return idx

    u_idx, p_idx, n_idx = prep(users), prep(pos_items), prep(neg_items)

    cost = pl.CostEstimate(
        flops=0,
        transcendentals=0,
        bytes_accessed=(3 * B_pad * 4
                        + (n_users + n_items) * D * itemsize
                        + 2 * 3 * B_pad * D * itemsize),
    )

    grid_spec = pltpu.PrefetchScalarGridSpec(
        num_scalar_prefetch=3,                       # u/p/n indices -> SMEM
        grid=(n_steps,),
        in_specs=[
            # Whole tables placed in VMEM once, no pipeline double-buffering.
            pl.BlockSpec(memory_space=pltpu.MemorySpace.VMEM),
            pl.BlockSpec(memory_space=pltpu.MemorySpace.VMEM),
        ],
        out_specs=[
            pl.BlockSpec((TB, D), lambda i, u, p, n: (i, 0)),
            pl.BlockSpec((TB, D), lambda i, u, p, n: (i, 0)),
            pl.BlockSpec((TB, D), lambda i, u, p, n: (i, 0)),
        ],
    )

    u_e, p_e, n_e = pl.pallas_call(
        _gather_kernel,
        out_shape=(
            jax.ShapeDtypeStruct((B_pad, D), dtype),
            jax.ShapeDtypeStruct((B_pad, D), dtype),
            jax.ShapeDtypeStruct((B_pad, D), dtype),
        ),
        grid_spec=grid_spec,
        compiler_params=pltpu.CompilerParams(
            # Batch blocks are independent -> shard across TCs on v7x.  Note
            # the tables are then duplicated per core (VMEM budget comment).
            dimension_semantics=("parallel",),
            vmem_limit_bytes=_vmem_limit_bytes(),
        ),
        cost_estimate=cost,
    )(u_idx, p_idx, n_idx, user_emb, item_emb)

    if B_pad != B:
        u_e, p_e, n_e = u_e[:B], p_e[:B], n_e[:B]
    # `aux` (the `_` argument) is passed through untouched, as in PyTorch.
    return u_e, p_e, n_e, aux


# ---------------------------------------------------------------------------
# rating(): torch.matmul(user_embedding, pos_i_embedding.t()) on the MXU.
# RHS pre-transposed once in the wrapper -> plain (tm, D) @ (D, tn) per tile.
# ---------------------------------------------------------------------------
def _rating_kernel(u_ref, pt_ref, o_ref):
    o_ref[...] = jnp.dot(
        u_ref[...], pt_ref[...], preferred_element_type=jnp.float32
    ).astype(o_ref.dtype)


def bprmf_rating(u_e, p_e, *, tm=256, tn=256, out_dtype=jnp.float32):
    # out_dtype=jnp.bfloat16 halves the (dominant) output HBM traffic if the
    # caller tolerates bf16 scores (kernel is HBM-bound on every generation).
    Bu, D = u_e.shape
    Bp, D2 = p_e.shape
    assert D == D2

    tm = min(tm, _round_up(Bu, 8))              # sublane-dense rows
    tn = min(max(tn, 128), _round_up(Bp, 128))  # lane-dense output tiles
    Bu_pad = _round_up(Bu, tm)
    Bp_pad = _round_up(Bp, tn)

    u_p = jnp.pad(u_e, ((0, Bu_pad - Bu), (0, 0))) if Bu_pad != Bu else u_e
    p_p = jnp.pad(p_e, ((0, Bp_pad - Bp), (0, 0))) if Bp_pad != Bp else p_e
    p_t = p_p.T                                  # (D, Bp_pad), one-time wrapper transpose

    in_isz = jnp.dtype(u_e.dtype).itemsize
    out_isz = jnp.dtype(out_dtype).itemsize
    gi, gj = Bu_pad // tm, Bp_pad // tn
    cost = pl.CostEstimate(
        flops=2 * Bu_pad * Bp_pad * D,
        transcendentals=0,
        bytes_accessed=in_isz * (Bu_pad * D * gj + Bp_pad * D * gi)
                       + out_isz * Bu_pad * Bp_pad,
    )

    out = pl.pallas_call(
        _rating_kernel,
        out_shape=jax.ShapeDtypeStruct((Bu_pad, Bp_pad), out_dtype),
        grid_spec=pltpu.PrefetchScalarGridSpec(
            num_scalar_prefetch=0,
            grid=(gi, gj),
            in_specs=[
                pl.BlockSpec((tm, D), lambda i, j: (i, 0)),
                pl.BlockSpec((D, tn), lambda i, j: (0, j)),
            ],
            out_specs=pl.BlockSpec((tm, tn), lambda i, j: (i, j)),
        ),
        compiler_params=pltpu.CompilerParams(
            dimension_semantics=("parallel", "parallel"),
            vmem_limit_bytes=_vmem_limit_bytes(),
        ),
        cost_estimate=cost,
    )(u_p, p_t)
    return out[:Bu, :Bp]


# ---------------------------------------------------------------------------
# Deterministic parameter init (xavier_uniform, as in init_weight()).
# ---------------------------------------------------------------------------
def xavier_uniform(key, shape, dtype=jnp.float32):
    fan_in, fan_out = shape[0], shape[1]
    bound = (6.0 / (fan_in + fan_out)) ** 0.5
    return jax.random.uniform(key, shape, dtype, minval=-bound, maxval=bound)


if __name__ == "__main__":
    n_users, n_items, embed_size, batch = 64, 96, 32, 8

    key = jax.random.PRNGKey(0)
    k_u, k_i, k_idx = jax.random.split(key, 3)

    user_emb = xavier_uniform(k_u, (n_users, embed_size))
    item_emb = xavier_uniform(k_i, (n_items, embed_size))

    k1, k2, k3 = jax.random.split(k_idx, 3)
    users     = jax.random.randint(k1, (batch,), 0, n_users, dtype=jnp.int32)
    pos_items = jax.random.randint(k2, (batch,), 0, n_items, dtype=jnp.int32)
    neg_items = jax.random.randint(k3, (batch,), 0, n_items, dtype=jnp.int32)
    aux = jnp.zeros((batch,), jnp.float32)   # the `_` pass-through argument

    u_e, p_e, n_e, aux_out = jax.block_until_ready(
        bprmf_forward(users, pos_items, neg_items, aux, user_emb, item_emb))

    # Reference check against plain-JAX gather (bit-exact row copies).
    assert jnp.allclose(u_e, user_emb[users, :])
    assert jnp.allclose(p_e, item_emb[pos_items, :])
    assert jnp.allclose(n_e, item_emb[neg_items, :])
    assert jnp.allclose(aux_out, aux)

    # rating() check.
    scores = jax.block_until_ready(bprmf_rating(u_e, p_e))
    assert scores.shape == (batch, batch)
    assert jnp.allclose(scores, u_e @ p_e.T, atol=1e-5)

    print("KERNEL_OK")
</pallas_src>

<mosaic_0001>
module attributes {stable_mosaic.version = 11 : i64} {
  func.func @_gather_kernel(%arg0: i32, %arg1: memref<8xi32, #tpu.memory_space<smem>>, %arg2: memref<8xi32, #tpu.memory_space<smem>>, %arg3: memref<8xi32, #tpu.memory_space<smem>>, %arg4: memref<64x32xf32, #tpu.memory_space<vmem>>, %arg5: memref<96x32xf32, #tpu.memory_space<vmem>>, %arg6: memref<8x32xf32, #tpu.memory_space<vmem>>, %arg7: memref<8x32xf32, #tpu.memory_space<vmem>>, %arg8: memref<8x32xf32, #tpu.memory_space<vmem>>) attributes {dimension_semantics = [#tpu.dimension_semantics<parallel>], iteration_bounds = array<i64: 1>, scalar_prefetch = 3 : i64, scratch_operands = 0 : i64, tpu.core_type = #tpu.core_type<tc>, window_params = [{pipeline_mode = #tpu.pipeline_mode<synchronous>, transform_indices = @transform_0, window_bounds = array<i64: 64, 32>}, {pipeline_mode = #tpu.pipeline_mode<synchronous>, transform_indices = @transform_1, window_bounds = array<i64: 96, 32>}, {transform_indices = @transform_2, window_bounds = array<i64: 8, 32>}, {transform_indices = @transform_3, window_bounds = array<i64: 8, 32>}, {transform_indices = @transform_4, window_bounds = array<i64: 8, 32>}]} {
    %c8_i32 = arith.constant 8 : i32
    %0 = arith.muli %arg0, %c8_i32 : i32
    %c0_i32 = arith.constant 0 : i32
    %c8_i32_0 = arith.constant 8 : i32
    %1 = arith.addi %c0_i32, %c8_i32_0 : i32
    %c1_i32 = arith.constant 1 : i32
    scf.for %arg9 = %c0_i32 to %1 step %c1_i32  : i32 {
      %2 = arith.addi %0, %arg9 : i32
      %3 = arith.index_cast %2 : i32 to index
      %4 = memref.load %arg1[%3] : memref<8xi32, #tpu.memory_space<smem>>
      %c0_i32_2 = arith.constant 0 : i32
      %c63_i32 = arith.constant 63 : i32
      %5 = arith.maxsi %c0_i32_2, %4 : i32
      %6 = arith.minsi %c63_i32, %5 : i32
      %7 = arith.addi %0, %arg9 : i32
      %8 = arith.index_cast %7 : i32 to index
      %9 = memref.load %arg2[%8] : memref<8xi32, #tpu.memory_space<smem>>
      %c0_i32_3 = arith.constant 0 : i32
      %c95_i32 = arith.constant 95 : i32
      %10 = arith.maxsi %c0_i32_3, %9 : i32
      %11 = arith.minsi %c95_i32, %10 : i32
      %12 = arith.addi %0, %arg9 : i32
      %13 = arith.index_cast %12 : i32 to index
      %14 = memref.load %arg3[%13] : memref<8xi32, #tpu.memory_space<smem>>
      %c0_i32_4 = arith.constant 0 : i32
      %c95_i32_5 = arith.constant 95 : i32
      %15 = arith.maxsi %c0_i32_4, %14 : i32
      %16 = arith.minsi %c95_i32_5, %15 : i32
      %17 = arith.index_cast %6 : i32 to index
      %c0 = arith.constant 0 : index
      %18 = vector.load %arg4[%17, %c0] : memref<64x32xf32, #tpu.memory_space<vmem>>, vector<1x32xf32>
      %19 = arith.index_cast %arg9 : i32 to index
      %c0_6 = arith.constant 0 : index
      %20 = vector.load %arg6[%19, %c0_6] : memref<8x32xf32, #tpu.memory_space<vmem>>, vector<1x32xf32>
      tpu.vector_store %arg6[%19, %c0_6], %18 {strides = array<i32>} : memref<8x32xf32, #tpu.memory_space<vmem>>, vector<1x32xf32>,
      %21 = arith.index_cast %11 : i32 to index
      %c0_7 = arith.constant 0 : index
      %22 = vector.load %arg5[%21, %c0_7] : memref<96x32xf32, #tpu.memory_space<vmem>>, vector<1x32xf32>
      %23 = arith.index_cast %arg9 : i32 to index
      %c0_8 = arith.constant 0 : index
      %24 = vector.load %arg7[%23, %c0_8] : memref<8x32xf32, #tpu.memory_space<vmem>>, vector<1x32xf32>
      tpu.vector_store %arg7[%23, %c0_8], %22 {strides = array<i32>} : memref<8x32xf32, #tpu.memory_space<vmem>>, vector<1x32xf32>,
      %25 = arith.index_cast %16 : i32 to index
      %c0_9 = arith.constant 0 : index
      %26 = vector.load %arg5[%25, %c0_9] : memref<96x32xf32, #tpu.memory_space<vmem>>, vector<1x32xf32>
      %27 = arith.index_cast %arg9 : i32 to index
      %c0_10 = arith.constant 0 : index
      %28 = vector.load %arg8[%27, %c0_10] : memref<8x32xf32, #tpu.memory_space<vmem>>, vector<1x32xf32>
      tpu.vector_store %arg8[%27, %c0_10], %26 {strides = array<i32>} : memref<8x32xf32, #tpu.memory_space<vmem>>, vector<1x32xf32>,
    }
    %c8_i32_1 = arith.constant 8 : i32
    return
  }
  func.func @transform_0(%arg0: i32, %arg1: memref<8xi32, #tpu.memory_space<smem>>, %arg2: memref<8xi32, #tpu.memory_space<smem>>, %arg3: memref<8xi32, #tpu.memory_space<smem>>) -> (i32, i32) {
    %c0_i32 = arith.constant 0 : i32
    %c0_i32_0 = arith.constant 0 : i32
    %c0_i32_1 = arith.constant 0 : i32
    return %c0_i32, %c0_i32_0 : i32, i32
  }
  func.func @transform_1(%arg0: i32, %arg1: memref<8xi32, #tpu.memory_space<smem>>, %arg2: memref<8xi32, #tpu.memory_space<smem>>, %arg3: memref<8xi32, #tpu.memory_space<smem>>) -> (i32, i32) {
    %c0_i32 = arith.constant 0 : i32
    %c0_i32_0 = arith.constant 0 : i32
    %c0_i32_1 = arith.constant 0 : i32
    return %c0_i32, %c0_i32_0 : i32, i32
  }
  func.func @transform_2(%arg0: i32, %arg1: memref<8xi32, #tpu.memory_space<smem>>, %arg2: memref<8xi32, #tpu.memory_space<smem>>, %arg3: memref<8xi32, #tpu.memory_space<smem>>) -> (i32, i32) {
    %c0_i32 = arith.constant 0 : i32
    %c0_i32_0 = arith.constant 0 : i32
    return %arg0, %c0_i32 : i32, i32
  }
  func.func @transform_3(%arg0: i32, %arg1: memref<8xi32, #tpu.memory_space<smem>>, %arg2: memref<8xi32, #tpu.memory_space<smem>>, %arg3: memref<8xi32, #tpu.memory_space<smem>>) -> (i32, i32) {
    %c0_i32 = arith.constant 0 : i32
    %c0_i32_0 = arith.constant 0 : i32
    return %arg0, %c0_i32 : i32, i32
  }
  func.func @transform_4(%arg0: i32, %arg1: memref<8xi32, #tpu.memory_space<smem>>, %arg2: memref<8xi32, #tpu.memory_space<smem>>, %arg3: memref<8xi32, #tpu.memory_space<smem>>) -> (i32, i32) {
    %c0_i32 = arith.constant 0 : i32
    %c0_i32_0 = arith.constant 0 : i32
    return %arg0, %c0_i32 : i32, i32
  }
}

</mosaic_0001>

<llo_original>
// kernel: tpu_custom_call.1
$region0: #{tpu_custom_call.1}
  #allocation0 [shape = 'u32[]', space=smem, size = 0x4, offset = 0x4, fixed_abs, tag = 'smem constant byte address 0x4 - core index']
  #allocation1 [shape = 'u32[144,128]{1,0:T(1,128)}', space=vmem, size = 0x12000, scoped, tag = 'internal scratch']
  #allocation2 [shape = 's32[1]{0}', space=sflag, size = 0x4, scoped, tag = 'scoped memory for tpu_custom_call.1']
  #allocation3 [shape = 'u8[512]{0}', space=smem, size = 0x200, scoped, tag = 'prefetched SMEM operand 0']
  #allocation4 [shape = 'u8[512]{0}', space=smem, size = 0x200, scoped, tag = 'prefetched SMEM operand 1']
  #allocation5 [shape = 'u8[512]{0}', space=smem, size = 0x200, scoped, tag = 'prefetched SMEM operand 2']
  %s0 = inlined_call_operand.hbm [shape: s32[8], index: 0, kind: input, shape index: {}]
  %s1 = inlined_call_operand.hbm [shape: s32[8], index: 1, kind: input, shape index: {}]
  %s2 = inlined_call_operand.hbm [shape: s32[8], index: 2, kind: input, shape index: {}]
  %s3 = inlined_call_operand.hbm [shape: f32[64,32], index: 3, kind: input, shape index: {}]
  %s4 = inlined_call_operand.hbm [shape: f32[96,32], index: 4, kind: input, shape index: {}]
  %s5 = inlined_call_operand.hbm [shape: f32[8,32], index: 5, kind: output, shape index: {0}]
  %s6 = inlined_call_operand.hbm [shape: f32[8,32], index: 6, kind: output, shape index: {1}]
  %s7 = inlined_call_operand.hbm [shape: f32[8,32], index: 7, kind: output, shape index: {2}]
  %8 = xla_tuple %s5, %s6, %s7
  %s9 = sld [smem:[#allocation0]]
  $region49: #{tpu_custom_call.1} parent=0
    _
  %s11 = ssub.s32 1, %s9
  %s12 = scalar_select 0, %s11, %s9
  %14 = dma.hbm_to_smem %s0, 16, [#allocation3], [#allocation2]
  %16 = dma.hbm_to_smem %s1, 16, [#allocation4], [#allocation2]
  %18 = dma.hbm_to_smem %s2, 16, [#allocation5], [#allocation2]
  %19 = dma.done [#allocation2], 48
  %20 = sfence
  $region1: #{tpu_custom_call.1} parent=0
    #allocation6 [shape = 'u8[32768]{0}', space=vmem, size = 0x8000, scoped, tag = 'input window, operand 3, single buffered']
    #allocation7 [shape = 's32[1]{0}', space=sflag, size = 0x4, scoped, tag = 'scoped memory for tpu_custom_call.1']
    #allocation8 [shape = 's32[1]{0}', space=sflag, size = 0x4, scoped, tag = 'scoped memory for tpu_custom_call.1']
    #allocation9 [shape = 'u8[49152]{0}', space=vmem, size = 0xc000, scoped, tag = 'input window, operand 4, single buffered']
    #allocation10 [shape = 's32[1]{0}', space=sflag, size = 0x4, scoped, tag = 'scoped memory for tpu_custom_call.1']
    #allocation11 [shape = 'u8[4096]{0}', space=vmem, size = 0x1000, scoped, tag = 'output window, operand 0, single buffered']
    #allocation12 [shape = 'u8[4096]{0}', space=vmem, size = 0x1000, scoped, tag = 'output window, operand 1, single buffered']
    #allocation13 [shape = 's32[1]{0}', space=sflag, size = 0x4, scoped, tag = 'scoped memory for tpu_custom_call.1']
    #allocation14 [shape = 'u8[4096]{0}', space=vmem, size = 0x1000, scoped, tag = 'output window, operand 2, single buffered']
    %21 = vsyncpa [#allocation7], 0
    %22 = vsyncpa [#allocation10], 0
    %23 = vsyncpa [#allocation8], 0
    %24 = vsyncpa [#allocation13], 0
    // Predicated region
    $region2: #{tpu_custom_call.1} parent=1 // pred_check
      _
    $region3: #{tpu_custom_call.1} parent=1 // pred_check_branch
      %26 = sbr.rel (0) target = $region5
    $region4: #{tpu_custom_call.1} parent=1 // pred_region
      %s28 = ssub.s32 1024, 1024
      %29 = vsyncadd [#allocation7], %s28
      %s30 = sshll.u32 [#allocation6], 4
      %s31 = int_to_ptr.vmem [resolvable:$true] %s30
      %36 = dma.hbm_to_vmem [thread:$0]  %s3, 1024, %s31, [#allocation7], 128, 128, 8
    $region5: #{tpu_custom_call.1} parent=1 // pred_fallthru
      _
    // Predicated region
    $region6: #{tpu_custom_call.1} parent=1 // pred_check
      _
    $region7: #{tpu_custom_call.1} parent=1 // pred_check_branch
      %38 = sbr.rel (0) target = $region9
    $region8: #{tpu_custom_call.1} parent=1 // pred_region
      %s40 = ssub.s32 1536, 1536
      %41 = vsyncadd [#allocation10], %s40
      %s42 = sshll.u32 [#allocation9], 4
      %s43 = int_to_ptr.vmem [resolvable:$true] %s42
      %48 = dma.hbm_to_vmem [thread:$0]  %s4, 1536, %s43, [#allocation10], 128, 128, 8
    $region9: #{tpu_custom_call.1} parent=1 // pred_fallthru
      _
    // Predicated region
    $region10: #{tpu_custom_call.1} parent=1 // pred_check
      _
    $region11: #{tpu_custom_call.1} parent=1 // pred_check_branch
      %50 = sbr.rel (0) target = $region13
    $region12: #{tpu_custom_call.1} parent=1 // pred_region
      %51 = dma.done [#allocation7], 1024
    $region13: #{tpu_custom_call.1} parent=1 // pred_fallthru
      _
    // Predicated region
    $region14: #{tpu_custom_call.1} parent=1 // pred_check
      _
    $region15: #{tpu_custom_call.1} parent=1 // pred_check_branch
      %53 = sbr.rel (0) target = $region17
    $region16: #{tpu_custom_call.1} parent=1 // pred_region
      %54 = dma.done [#allocation10], 1536
    $region17: #{tpu_custom_call.1} parent=1 // pred_fallthru
      _
    %s55 = smul.u32 0, 8
    loop: start=0, step=1, limit=8
    $region18: #{tpu_custom_call.1} parent=1 // loop_pre_header
      _
    $region19: #{tpu_custom_call.1} parent=1 // loop_header
      %s57 = sphi 0, %s61
      %p58 = scmp.ge.s32.totalorder %s57, 8
    $region20: #{tpu_custom_call.1} parent=1 // loop_header_branch
      %60 = sbr.rel (%p58) target = $region24
    $region21: #{tpu_custom_call.1} parent=1 // loop_body
      %s62 = sadd.s32 %s55, %s57
      %s63 = sld [smem:[#allocation3 + %s62]]
      %p64 = scmp.gt.s32.totalorder %s63, 0
      %s65 = scalar_select %p64, %s63, 0
      %p66 = scmp.lt.s32.totalorder %s65, 63
      %s67 = scalar_select %p66, %s65, 63
      %s68 = sld [smem:[#allocation4 + %s62]]
      %p69 = scmp.gt.s32.totalorder %s68, 0
      %s70 = scalar_select %p69, %s68, 0
      %p71 = scmp.lt.s32.totalorder %s70, 95
      %s72 = scalar_select %p71, %s70, 95
      %s73 = sld [smem:[#allocation5 + %s62]]
      %p74 = scmp.gt.s32.totalorder %s73, 0
      %s75 = scalar_select %p74, %s73, 0
      %p76 = scmp.lt.s32.totalorder %s75, 95
      %s77 = scalar_select %p76, %s75, 95
      %s78 = scalar_lea.vmem [#allocation6], %s67
      %v79 = vld [vmem:[%s78] sm:$0x1]
      %s80 = scalar_lea.vmem [#allocation11], %s57
      %vm81 = vcmask 253952
      %82 = vst.msk [vmem:[%s80] sm:$0x1] %vm81, %v79
      %s83 = scalar_lea.vmem [#allocation9], %s72
      %v84 = vld [vmem:[%s83] sm:$0x1]
      %s85 = scalar_lea.vmem [#allocation12], %s57
      %86 = vst.msk [vmem:[%s85] sm:$0x1] %vm81, %v84
      %s87 = scalar_lea.vmem [#allocation9], %s77
      %v88 = vld [vmem:[%s87] sm:$0x1]
      %s89 = scalar_lea.vmem [#allocation14], %s57
      %90 = vst.msk [vmem:[%s89] sm:$0x1] %vm81, %v88
    $region22: #{tpu_custom_call.1} parent=1 // loop_footer
      %s61 = sadd.s32 1, %s57
    $region23: #{tpu_custom_call.1} parent=1 // loop_footer_branch
      %56 = sbr.rel target = $region19
    $region24: #{tpu_custom_call.1} parent=1 // loop_exit
      _
    // Predicated region
    $region25: #{tpu_custom_call.1} parent=1 // pred_check
      _
    $region26: #{tpu_custom_call.1} parent=1 // pred_check_branch
      %92 = sbr.rel (0) target = $region28
    $region27: #{tpu_custom_call.1} parent=1 // pred_region
      %s94 = ssub.s32 128, 128
      %95 = vsyncadd [#allocation8], %s94
      %s97 = sshll.u32 [#allocation11], 4
      %s98 = int_to_ptr.vmem [resolvable:$true] %s97
      %100 = dma.vmem_to_hbm [thread:$0]  %s98, 128, %s5, [#allocation8]
    $region28: #{tpu_custom_call.1} parent=1 // pred_fallthru
      _
    // Predicated region
    $region29: #{tpu_custom_call.1} parent=1 // pred_check
      _
    $region30: #{tpu_custom_call.1} parent=1 // pred_check_branch
      %102 = sbr.rel (0) target = $region32
    $region31: #{tpu_custom_call.1} parent=1 // pred_region
      %s104 = ssub.s32 128, 128
      %105 = vsyncadd [#allocation13], %s104
      %s107 = sshll.u32 [#allocation12], 4
      %s108 = int_to_ptr.vmem [resolvable:$true] %s107
      %110 = dma.vmem_to_hbm [thread:$0]  %s108, 128, %s6, [#allocation13]
    $region32: #{tpu_custom_call.1} parent=1 // pred_fallthru
      _
    // Predicated region
    $region33: #{tpu_custom_call.1} parent=1 // pred_check
      _
    $region34: #{tpu_custom_call.1} parent=1 // pred_check_branch
      %112 = sbr.rel (0) target = $region36
    $region35: #{tpu_custom_call.1} parent=1 // pred_region
      %s114 = ssub.s32 128, 128
      %115 = vsyncadd [#allocation13], %s114
      %s117 = sshll.u32 [#allocation14], 4
      %s118 = int_to_ptr.vmem [resolvable:$true] %s117
      %120 = dma.vmem_to_hbm [thread:$0]  %s118, 128, %s7, [#allocation13]
    $region36: #{tpu_custom_call.1} parent=1 // pred_fallthru
      _
    // Predicated region
    $region37: #{tpu_custom_call.1} parent=1 // pred_check
      _
    $region38: #{tpu_custom_call.1} parent=1 // pred_check_branch
      %122 = sbr.rel (0) target = $region40
    $region39: #{tpu_custom_call.1} parent=1 // pred_region
      %123 = dma.done [#allocation8], 128
    $region40: #{tpu_custom_call.1} parent=1 // pred_fallthru
      _
    // Predicated region
    $region41: #{tpu_custom_call.1} parent=1 // pred_check
      _
    $region42: #{tpu_custom_call.1} parent=1 // pred_check_branch
      %125 = sbr.rel (0) target = $region44
    $region43: #{tpu_custom_call.1} parent=1 // pred_region
      %126 = dma.done [#allocation13], 128
    $region44: #{tpu_custom_call.1} parent=1 // pred_fallthru
      _
    // Predicated region
    $region45: #{tpu_custom_call.1} parent=1 // pred_check
      _
    $region46: #{tpu_custom_call.1} parent=1 // pred_check_branch
      %128 = sbr.rel (0) target = $region48
    $region47: #{tpu_custom_call.1} parent=1 // pred_region
      %129 = dma.done [#allocation13], 128
    $region48: #{tpu_custom_call.1} parent=1 // pred_fallthru
      _
    %130 = vsyncpa [#allocation7], 1
    %131 = vsyncpa [#allocation10], 1
    %132 = vsyncpa [#allocation8], 1
    %133 = vsyncpa [#allocation13], 1

</llo_original>
